<compile_context>
chip_gen: v5e
topology: v5e:2x2
jax: 0.10.0
libtpu: 0.0.40
codegen_flags: <defaults>
</compile_context>

<pallas_src>
import jax
import jax.numpy as jnp
import numpy as np
from jax.experimental import pallas as pl
from jax.experimental.pallas import tpu as pltpu


def _concat_condition_kernel(sid_ref, x_ref, emb_ref, o_ref):
    # sid_ref is the SMEM scalar-prefetch ref; it is consumed by the index_maps only.
    del sid_ref
    x = x_ref[...]                 # (1, tile_t, Dx)
    emb = emb_ref[...]             # (1, 1, De) -- this batch's speaker embedding row
    tile_t = x.shape[1]
    emb_b = jnp.broadcast_to(emb, (1, tile_t, emb.shape[-1]))
    # Single lane-dense store of the full concatenated slab.
    o_ref[...] = jnp.concatenate([x, emb_b], axis=-1).astype(o_ref.dtype)


def concate_condition(x, emb_table, speaker_id, *, tile_t=256):
    """x: (B, T, Dx) float; emb_table: (num_spk, De); speaker_id: (B,) int."""
    B, T, Dx = x.shape
    num_spk, De = emb_table.shape
    Dout = Dx + De

    # Large, sublane-aligned row tile; use full T when T is small.
    tile_t = min(tile_t, T)
    if tile_t < T:
        tile_t = max(8, (tile_t // 8) * 8)
    grid = (B, pl.cdiv(T, tile_t))

    sid = jnp.asarray(speaker_id, jnp.int32)
    emb3 = emb_table.reshape(num_spk, 1, De)   # gathered block becomes (1, 1, De)

    # index_maps receive (grid indices..., *scalar_prefetch_refs)
    in_specs = [
        pl.BlockSpec((1, tile_t, Dx), lambda b, t, sid_ref: (b, t, 0)),
        pl.BlockSpec((1, 1, De), lambda b, t, sid_ref: (sid_ref[b], 0, 0)),
    ]
    out_spec = pl.BlockSpec((1, tile_t, Dout), lambda b, t, sid_ref: (b, t, 0))

    # Explicit VMEM budget with headroom (double-buffered blocks), v7x-safe cap.
    elt = jnp.dtype(x.dtype).itemsize
    needed = 2 * tile_t * Dx * elt + 2 * De * elt + 2 * tile_t * Dout * elt
    vmem_limit = int(min(64 * 1024 * 1024, max(4 * 1024 * 1024, 4 * needed)))

    out = pl.pallas_call(
        _concat_condition_kernel,
        out_shape=jax.ShapeDtypeStruct((B, T, Dout), x.dtype),
        grid_spec=pltpu.PrefetchScalarGridSpec(
            num_scalar_prefetch=1,
            grid=grid,
            in_specs=in_specs,
            out_specs=out_spec,
        ),
        compiler_params=pltpu.CompilerParams(
            dimension_semantics=("parallel", "parallel"),
            vmem_limit_bytes=vmem_limit,
        ),
    )(sid, x, emb3)
    return out


def _concate_condition_ref(x, emb_table, speaker_id):
    """Pure-JAX reference of the torch forward."""
    emb = emb_table[speaker_id]                                   # (B, De)
    emb = jnp.broadcast_to(emb[:, None, :],
                           (x.shape[0], x.shape[1], emb.shape[-1]))
    return jnp.concatenate([x, emb], axis=-1)


if __name__ == "__main__":
    key = jax.random.PRNGKey(0)
    k_x, k_e, k_s = jax.random.split(key, 3)

    # Small shapes consistent with the module: batch=2, seq=8, feat=32, emb_dim=16.
    B, T, Dx = 2, 8, 32
    num_spk, De = 4, 16

    x = jax.random.normal(k_x, (B, T, Dx), dtype=jnp.float32)
    # torch.nn.Embedding default init is N(0, 1)
    emb_table = jax.random.normal(k_e, (num_spk, De), dtype=jnp.float32)
    speaker_id = jax.random.randint(k_s, (B,), 0, num_spk, dtype=jnp.int32)

    y = concate_condition(x, emb_table, speaker_id)
    y = jax.block_until_ready(y)

    y_ref = _concate_condition_ref(x, emb_table, speaker_id)
    np.testing.assert_allclose(np.asarray(y), np.asarray(y_ref), rtol=1e-6, atol=1e-6)
    assert y.shape == (B, T, Dx + De)

    print("KERNEL_OK")
</pallas_src>

<mosaic_0001>
module attributes {stable_mosaic.version = 11 : i64} {
  func.func @_concat_condition_kernel(%arg0: i32, %arg1: i32, %arg2: memref<2xi32, #tpu.memory_space<smem>>, %arg3: memref<1x8x32xf32, #tpu.memory_space<vmem>>, %arg4: memref<1x1x16xf32, #tpu.memory_space<vmem>>, %arg5: memref<1x8x48xf32, #tpu.memory_space<vmem>>) attributes {dimension_semantics = [#tpu.dimension_semantics<parallel>, #tpu.dimension_semantics<parallel>], iteration_bounds = array<i64: 2, 1>, scalar_prefetch = 1 : i64, scratch_operands = 0 : i64, tpu.core_type = #tpu.core_type<tc>, window_params = [{transform_indices = @transform_0, window_bounds = array<i64: 1, 8, 32>}, {transform_indices = @transform_1, window_bounds = array<i64: 1, 1, 16>}, {transform_indices = @transform_2, window_bounds = array<i64: 1, 8, 48>}]} {
    %c0 = arith.constant 0 : index
    %c0_0 = arith.constant 0 : index
    %c0_1 = arith.constant 0 : index
    %0 = vector.load %arg3[%c0, %c0_0, %c0_1] : memref<1x8x32xf32, #tpu.memory_space<vmem>>, vector<1x8x32xf32>
    %c0_2 = arith.constant 0 : index
    %c0_3 = arith.constant 0 : index
    %c0_4 = arith.constant 0 : index
    %1 = vector.load %arg4[%c0_2, %c0_3, %c0_4] : memref<1x1x16xf32, #tpu.memory_space<vmem>>, vector<1x1x16xf32>
    %2 = vector.shape_cast %1 : vector<1x1x16xf32> to vector<1x1x16xf32>
    %3 = vector.broadcast %2 : vector<1x1x16xf32> to vector<1x8x16xf32>
    %4 = tpu.concatenate %0, %3 in 2 : vector<1x8x32xf32>, vector<1x8x16xf32> -> vector<1x8x48xf32>
    %c0_5 = arith.constant 0 : index
    %c0_6 = arith.constant 0 : index
    %c0_7 = arith.constant 0 : index
    %5 = vector.load %arg5[%c0_5, %c0_6, %c0_7] : memref<1x8x48xf32, #tpu.memory_space<vmem>>, vector<1x8x48xf32>
    tpu.vector_store %arg5[%c0_5, %c0_6, %c0_7], %4 {strides = array<i32>} : memref<1x8x48xf32, #tpu.memory_space<vmem>>, vector<1x8x48xf32>,
    return
  }
  func.func @transform_0(%arg0: i32, %arg1: i32, %arg2: memref<2xi32, #tpu.memory_space<smem>>) -> (i32, i32, i32) {
    %c0_i32 = arith.constant 0 : i32
    %c0_i32_0 = arith.constant 0 : i32
    return %arg0, %arg1, %c0_i32 : i32, i32, i32
  }
  func.func @transform_1(%arg0: i32, %arg1: i32, %arg2: memref<2xi32, #tpu.memory_space<smem>>) -> (i32, i32, i32) {
    %0 = arith.index_cast %arg0 : i32 to index
    %1 = memref.load %arg2[%0] : memref<2xi32, #tpu.memory_space<smem>>
    %c0_i32 = arith.constant 0 : i32
    %c0_i32_0 = arith.constant 0 : i32
    %c0_i32_1 = arith.constant 0 : i32
    return %1, %c0_i32, %c0_i32_0 : i32, i32, i32
  }
  func.func @transform_2(%arg0: i32, %arg1: i32, %arg2: memref<2xi32, #tpu.memory_space<smem>>) -> (i32, i32, i32) {
    %c0_i32 = arith.constant 0 : i32
    %c0_i32_0 = arith.constant 0 : i32
    return %arg0, %arg1, %c0_i32 : i32, i32, i32
  }
}

</mosaic_0001>

<llo_original>
// kernel: tpu_custom_call.1
$region0: #{tpu_custom_call.1}
  #allocation0 [shape = 'u32[]', space=smem, size = 0x4, offset = 0x4, fixed_abs, tag = 'smem constant byte address 0x4 - core index']
  #allocation1 [shape = 'u32[72,128]{1,0:T(1,128)}', space=vmem, size = 0x9000, scoped, tag = 'internal scratch']
  #allocation2 [shape = 's32[1]{0}', space=sflag, size = 0x4, scoped, tag = 'scoped memory for tpu_custom_call.1']
  #allocation3 [shape = 'u8[512]{0}', space=smem, size = 0x200, scoped, tag = 'prefetched SMEM operand 0']
  %s0 = inlined_call_operand.hbm [shape: s32[2], index: 0, kind: input, shape index: {}]
  %s1 = inlined_call_operand.hbm [shape: f32[2,8,32], index: 1, kind: input, shape index: {}]
  %s2 = inlined_call_operand.hbm [shape: f32[4,1,16], index: 2, kind: input, shape index: {}]
  %s3 = inlined_call_operand.hbm [shape: f32[2,8,48], index: 3, kind: output, shape index: {}]
  %s4 = sld [smem:[#allocation0]]
  $region49: #{tpu_custom_call.1} parent=0
    _
  %s6 = ssub.s32 1, %s4
  %s7 = scalar_select 0, %s6, %s4
  %s9 = sshll.u32 %s0, 4
  %s10 = int_to_ptr.hbm [resolvable:$true] %s9
  %12 = dma.hbm_to_smem %s10, 16, [#allocation3], [#allocation2]
  %14 = dma.done [#allocation2], 16
  %15 = sfence
  $region1: #{tpu_custom_call.1} parent=0
    #allocation4 [shape = 'u8[8192]{0}', space=vmem, size = 0x2000, scoped, tag = 'input window, operand 1']
    #allocation5 [shape = 's32[2]{0}', space=sflag, size = 0x8, scoped, tag = 'scoped memory for tpu_custom_call.1']
    #allocation6 [shape = 's32[2]{0}', space=sflag, size = 0x8, scoped, tag = 'scoped memory for tpu_custom_call.1']
    #allocation7 [shape = 'u8[1024]{0}', space=vmem, size = 0x400, scoped, tag = 'input window, operand 2']
    #allocation8 [shape = 's32[2]{0}', space=sflag, size = 0x8, scoped, tag = 'scoped memory for tpu_custom_call.1']
    #allocation9 [shape = 'u8[8192]{0}', space=vmem, size = 0x2000, scoped, tag = 'output window, operand 0']
    %16 = vsyncpa [#allocation5], 0
    %s17 = scalar_lea.sflag [#allocation5], 1
    %18 = vsyncpa %s17, 0
    %19 = vsyncpa [#allocation8], 0
    %s20 = scalar_lea.sflag [#allocation8], 1
    %21 = vsyncpa %s20, 0
    %22 = vsyncpa [#allocation6], 0
    %s23 = scalar_lea.sflag [#allocation6], 1
    %24 = vsyncpa %s23, 0
    loop: start=0, step=1, limit=4
    $region2: #{tpu_custom_call.1} parent=1 // loop_pre_header
      _
    $region3: #{tpu_custom_call.1} parent=1 // loop_header
      %s26 = sphi 0, %s30
      %p27 = scmp.ge.s32.totalorder %s26, 4
      %s33 = sphi 0, %s45
      %s34 = sphi 0, %s41
      %s35 = sphi 0, %s33
      %s36 = sphi 0, %s34
      %s37 = sphi 0, %s35
      %s38 = sphi 0, %s36
      %s50 = sphi 0, %s52
      %s53 = sphi 0, %s50
      %s54 = sphi 0, %s53
      %s70 = sphi 0, %s54
      %s78 = sphi 0, %s80
      %s81 = sphi 0, %s78
      %s82 = sphi 0, %s81
      %s98 = sphi 0, %s82
      %s106 = sphi 0, %s108
      %s109 = sphi 0, %s106
      %s110 = sphi 0, %s109
      %s126 = sphi 0, %s110
    $region4: #{tpu_custom_call.1} parent=1 // loop_header_branch
      %29 = sbr.rel (%p27) target = $region8
    $region5: #{tpu_custom_call.1} parent=1 // loop_body
      %s31 = ssub.s32 %s26, 1
      %s32 = ssub.s32 %s26, 2
      %s39 = sadd.s32 1, %s34
      %p40 = scmp.ge.s32.totalorder %s39, 1
      %s41 = scalar_select %p40, 0, %s39
      %s42 = sadd.s32 1, %s33
      %s43 = scalar_select %p40, %s42, %s33
      %p44 = scmp.ge.s32.totalorder %s43, 2
      %s45 = scalar_select %p44, 0, %s43
      %s46 = ssub.s32 %s33, %s45
      %s47 = ssub.s32 %s34, %s41
      %s48 = sor.u32 %s46, %s47
      %p49 = scmp.eq.s32.totalorder %s48, 0
      %s51 = sadd.s32 %s50, 1
      %s52 = scalar_select %p49, %s50, %s51
      %p55 = pneg %p49
      %p56 = scmp.eq.s32.totalorder %s26, 1
      %p57 = por %p55, %p56
      %p58 = scmp.ne.s32.totalorder %s50, %s53
      %p59 = scmp.eq.s32.totalorder %s26, 0
      %p60 = por %p58, %p59
      %p61 = scmp.ne.s32.totalorder %s50, %s53
      %p62 = scmp.eq.s32.totalorder %s31, 1
      %p63 = por %p61, %p62
      %p64 = scmp.ne.s32.totalorder %s53, %s54
      %p65 = scmp.eq.s32.totalorder %s31, 0
      %p66 = por %p64, %p65
      %p67 = scmp.ne.s32.totalorder %s53, %s54
      %p68 = scmp.eq.s32.totalorder %s32, 1
      %p69 = por %p67, %p68
      %p71 = scmp.ne.s32.totalorder %s54, %s70
      %p72 = scmp.eq.s32.totalorder %s32, 0
      %p73 = por %p71, %p72
      %s74 = sld [smem:[#allocation3 + %s33]]
      %s75 = sld [smem:[#allocation3 + %s45]]
      %s76 = ssub.s32 %s74, %s75
      %p77 = scmp.eq.s32.totalorder %s76, 0
      %s79 = sadd.s32 %s78, 1
      %s80 = scalar_select %p77, %s78, %s79
      %p83 = pneg %p77
      %p84 = scmp.eq.s32.totalorder %s26, 1
      %p85 = por %p83, %p84
      %p86 = scmp.ne.s32.totalorder %s78, %s81
      %p87 = scmp.eq.s32.totalorder %s26, 0
      %p88 = por %p86, %p87
      %p89 = scmp.ne.s32.totalorder %s78, %s81
      %p90 = scmp.eq.s32.totalorder %s31, 1
      %p91 = por %p89, %p90
      %p92 = scmp.ne.s32.totalorder %s81, %s82
      %p93 = scmp.eq.s32.totalorder %s31, 0
      %p94 = por %p92, %p93
      %p95 = scmp.ne.s32.totalorder %s81, %s82
      %p96 = scmp.eq.s32.totalorder %s32, 1
      %p97 = por %p95, %p96
      %p99 = scmp.ne.s32.totalorder %s82, %s98
      %p100 = scmp.eq.s32.totalorder %s32, 0
      %p101 = por %p99, %p100
      %s102 = ssub.s32 %s33, %s45
      %s103 = ssub.s32 %s34, %s41
      %s104 = sor.u32 %s102, %s103
      %p105 = scmp.eq.s32.totalorder %s104, 0
      %s107 = sadd.s32 %s106, 1
      %s108 = scalar_select %p105, %s106, %s107
      %p111 = pneg %p105
      %p112 = scmp.eq.s32.totalorder %s26, 1
      %p113 = por %p111, %p112
      %p114 = scmp.ne.s32.totalorder %s106, %s109
      %p115 = scmp.eq.s32.totalorder %s26, 0
      %p116 = por %p114, %p115
      %p117 = scmp.ne.s32.totalorder %s106, %s109
      %p118 = scmp.eq.s32.totalorder %s31, 1
      %p119 = por %p117, %p118
      %p120 = scmp.ne.s32.totalorder %s109, %s110
      %p121 = scmp.eq.s32.totalorder %s31, 0
      %p122 = por %p120, %p121
      %p123 = scmp.ne.s32.totalorder %s109, %s110
      %p124 = scmp.eq.s32.totalorder %s32, 1
      %p125 = por %p123, %p124
      %p127 = scmp.ne.s32.totalorder %s110, %s126
      %p128 = scmp.eq.s32.totalorder %s32, 0
      %p129 = por %p127, %p128
      %p130 = scmp.le.s32.totalorder 1, %s26
      %p131 = scmp.lt.s32.totalorder %s26, 3
      %p132 = pnand %p130, %p131
      %p133 = pneg %p132
      // Predicated region
      $region9: #{tpu_custom_call.1} parent=5 // pred_check
        _
      $region10: #{tpu_custom_call.1} parent=5 // pred_check_branch
        %135 = sbr.rel (%p132) target = $region12
      $region11: #{tpu_custom_call.1} parent=5 // pred_region
        %s136 = ssub.s32 %s26, 1
      $region12: #{tpu_custom_call.1} parent=5 // pred_fallthru
        _
      %p137 = scmp.lt.s32.totalorder %s26, 2
      // Predicated region
      $region13: #{tpu_custom_call.1} parent=5 // pred_check
        %p138 = pneg %p137
      $region14: #{tpu_custom_call.1} parent=5 // pred_check_branch
        %140 = sbr.rel (%p138) target = $region16
      $region15: #{tpu_custom_call.1} parent=5 // pred_region
        // Predicated region
        $region17: #{tpu_custom_call.1} parent=15 // pred_check
          %p141 = pneg %p60
        $region18: #{tpu_custom_call.1} parent=15 // pred_check_branch
          %143 = sbr.rel (%p141) target = $region20
        $region19: #{tpu_custom_call.1} parent=15 // pred_region
          %s144 = sand.u32 %s50, 1
          %s145 = scalar_lea.sflag [#allocation5], %s144
          %s146 = sand.u32 %s50, 1
          %s147 = smul.addr %s146, 8
          %s148 = scalar_lea.vmem [#allocation4], %s147
          %150 = vsyncadd %s145, 0
          %s151 = sadd.s32 %s34, %s33
          %s152 = smul.addr %s151, 8
          %s153 = scalar_lea.hbm %s1, %s152
          %s155 = sshll.u32 %s153, 4
          %s156 = int_to_ptr.hbm [resolvable:$true] %s155
          %s157 = sshll.u32 %s148, 4
          %s158 = int_to_ptr.vmem [resolvable:$true] %s157
          %160 = dma.hbm_to_vmem [thread:$0]  %s156, 128, %s158, %s145
        $region20: #{tpu_custom_call.1} parent=15 // pred_fallthru
          _
        // Predicated region
        $region21: #{tpu_custom_call.1} parent=15 // pred_check
          %p161 = pneg %p88
        $region22: #{tpu_custom_call.1} parent=15 // pred_check_branch
          %163 = sbr.rel (%p161) target = $region24
        $region23: #{tpu_custom_call.1} parent=15 // pred_region
          %s164 = sand.u32 %s78, 1
          %s165 = scalar_lea.sflag [#allocation8], %s164
          %s166 = sand.u32 %s78, 1
          %s167 = scalar_lea.vmem [#allocation7], %s166
          %s168 = sld [smem:[#allocation3 + %s33]]
          %170 = vsyncadd %s165, 0
          %s171 = scalar_lea.hbm %s2, %s168
          %s173 = sshll.u32 %s171, 4
          %s174 = int_to_ptr.hbm [resolvable:$true] %s173
          %s175 = sshll.u32 %s167, 4
          %s176 = int_to_ptr.vmem [resolvable:$true] %s175
          %178 = dma.hbm_to_vmem [thread:$0]  %s174, 16, %s176, %s165
        $region24: #{tpu_custom_call.1} parent=15 // pred_fallthru
          _
      $region16: #{tpu_custom_call.1} parent=5 // pred_fallthru
        _
      %p179 = scmp.le.s32.totalorder 1, %s26
      %p180 = scmp.lt.s32.totalorder %s26, 3
      %p181 = pnand %p179, %p180
      %p182 = pneg %p181
      // Predicated region
      $region25: #{tpu_custom_call.1} parent=5 // pred_check
        _
      $region26: #{tpu_custom_call.1} parent=5 // pred_check_branch
        %184 = sbr.rel (%p181) target = $region28
      $region27: #{tpu_custom_call.1} parent=5 // pred_region
        %s185 = ssub.s32 %s26, 1
        %s186 = sand.u32 %s53, 1
        %s187 = scalar_lea.sflag [#allocation5], %s186
        %s188 = sand.u32 %s53, 1
        %s189 = smul.addr %s188, 8
        %s190 = scalar_lea.vmem [#allocation4], %s189
        // Predicated region
        $region29: #{tpu_custom_call.1} parent=27 // pred_check
          %p191 = pneg %p66
        $region30: #{tpu_custom_call.1} parent=27 // pred_check_branch
          %193 = sbr.rel (%p191) target = $region32
        $region31: #{tpu_custom_call.1} parent=27 // pred_region
          %195 = dma.done %s187, 128
        $region32: #{tpu_custom_call.1} parent=27 // pred_fallthru
          _
        %s196 = sand.u32 %s81, 1
        %s197 = scalar_lea.sflag [#allocation8], %s196
        %s198 = sand.u32 %s81, 1
        %s199 = scalar_lea.vmem [#allocation7], %s198
        // Predicated region
        $region33: #{tpu_custom_call.1} parent=27 // pred_check
          %p200 = pneg %p94
        $region34: #{tpu_custom_call.1} parent=27 // pred_check_branch
          %202 = sbr.rel (%p200) target = $region36
        $region35: #{tpu_custom_call.1} parent=27 // pred_region
          %204 = dma.done %s197, 16
        $region36: #{tpu_custom_call.1} parent=27 // pred_fallthru
          _
        %s205 = sand.u32 %s53, 1
        %s206 = scalar_lea.sflag [#allocation5], %s205
        %s207 = sand.u32 %s53, 1
        %s208 = smul.addr %s207, 8
        %s209 = scalar_lea.vmem [#allocation4], %s208
        %p210 = pneg %p66
        %p211 = pneg %p63
        %s212 = sand.u32 %s81, 1
        %s213 = scalar_lea.sflag [#allocation8], %s212
        %s214 = sand.u32 %s81, 1
        %s215 = scalar_lea.vmem [#allocation7], %s214
        %p216 = pneg %p94
        %p217 = pneg %p91
        %p218 = pneg %p122
        %p219 = pneg %p119
        %s220 = sand.u32 %s109, 1
        %s221 = scalar_lea.sflag [#allocation6], %s220
        %s222 = sand.u32 %s109, 1
        %s223 = smul.addr %s222, 8
        %s224 = scalar_lea.vmem [#allocation9], %s223
        %s225 = sld [smem:[#allocation3 + %s35]]
        %v226 = vld [vmem:[%s190] sm:$0xff]
        %v227 = vld [vmem:[%s199] sm:$0x1]
        %v229 = vperm.slane %v227, 0
        %230 = vrot.lane.b32.xlu0 %v229, 32
        %v231 = vpop.permute.xlu0 %230
        %vm233 = vcmask 261120
        %v234 = vsel %vm233, %v226, %v231
        %vm235 = vcmask 392192
        %236 = vst.msk [vmem:[%s224] sm:$0xff] %vm235, %v234
        %s237 = sand.u32 %s109, 1
        %s238 = scalar_lea.sflag [#allocation6], %s237
        %s239 = sand.u32 %s109, 1
        %s240 = smul.addr %s239, 8
        %s241 = scalar_lea.vmem [#allocation9], %s240
        // Predicated region
        $region37: #{tpu_custom_call.1} parent=27 // pred_check
          %p242 = pneg %p119
        $region38: #{tpu_custom_call.1} parent=27 // pred_check_branch
          %244 = sbr.rel (%p242) target = $region40
        $region39: #{tpu_custom_call.1} parent=27 // pred_region
          %246 = vsyncadd %s238, 0
          %s247 = sadd.s32 %s36, %s35
          %s248 = smul.addr %s247, 8
          %s249 = scalar_lea.hbm %s3, %s248
          %s251 = sshll.u32 %s241, 4
          %s252 = int_to_ptr.vmem [resolvable:$true] %s251
          %s253 = sshll.u32 %s249, 4
          %s254 = int_to_ptr.hbm [resolvable:$true] %s253
          %256 = dma.vmem_to_hbm [thread:$0]  %s252, 128, %s254, %s238
        $region40: #{tpu_custom_call.1} parent=27 // pred_fallthru
          _
      $region28: #{tpu_custom_call.1} parent=5 // pred_fallthru
        _
      %p257 = scmp.le.s32.totalorder 2, %s26
      // Predicated region
      $region41: #{tpu_custom_call.1} parent=5 // pred_check
        %p258 = pneg %p257
      $region42: #{tpu_custom_call.1} parent=5 // pred_check_branch
        %260 = sbr.rel (%p258) target = $region44
      $region43: #{tpu_custom_call.1} parent=5 // pred_region
        %s261 = ssub.s32 %s26, 2
        // Predicated region
        $region45: #{tpu_custom_call.1} parent=43 // pred_check
          %p262 = pneg %p125
        $region46: #{tpu_custom_call.1} parent=43 // pred_check_branch
          %264 = sbr.rel (%p262) target = $region48
        $region47: #{tpu_custom_call.1} parent=43 // pred_region
          %s265 = sand.u32 %s110, 1
          %s266 = scalar_lea.sflag [#allocation6], %s265
          %s267 = sand.u32 %s110, 1
          %s268 = smul.addr %s267, 8
          %s269 = scalar_lea.vmem [#allocation9], %s268
          %271 = dma.done %s266, 128
        $region48: #{tpu_custom_call.1} parent=43 // pred_fallthru
          _
      $region44: #{tpu_custom_call.1} parent=5 // pred_fallthru
        _
    $region6: #{tpu_custom_call.1} parent=1 // loop_footer
      %s30 = sadd.s32 1, %s26
    $region7: #{tpu_custom_call.1} parent=1 // loop_footer_branch
      %25 = sbr.rel target = $region3
    $region8: #{tpu_custom_call.1} parent=1 // loop_exit
      _
    %272 = vsyncpa [#allocation5], 1
    %s273 = scalar_lea.sflag [#allocation5], 1
    %274 = vsyncpa %s273, 1
    %275 = vsyncpa [#allocation8], 1
    %s276 = scalar_lea.sflag [#allocation8], 1
    %277 = vsyncpa %s276, 1
    %278 = vsyncpa [#allocation6], 1
    %s279 = scalar_lea.sflag [#allocation6], 1
    %280 = vsyncpa %s279, 1

</llo_original>
